<compile_context>
chip_gen: v7x
topology: tpu7x:2x2x1
jax: 0.10.0
libtpu: 0.0.40
codegen_flags: <defaults>
</compile_context>

<pallas_src>
import functools

import jax
import jax.numpy as jnp
from jax.experimental import pallas as pl
from jax.experimental.pallas import tpu as pltpu


def _focal_loss_kernel(x_ref, t_ref, out_ref, acc_ref, *,
                       gamma, alpha_vals, spatial_size, has_pad):
    # x_ref: (1, C, sb, 128) logits, t_ref: (1, sb, 128) int targets,
    # out_ref: (1, 1, 1, 128) lane-wise partial sums, acc_ref: (sb, 128) f32.
    p = pl.program_id(1)          # core-split index over the spatial axis
    s = pl.program_id(2)          # spatial tile index (reduction axis)
    n_s = pl.num_programs(2)

    C = x_ref.shape[1]
    sb = x_ref.shape[2]
    lanes = x_ref.shape[3]

    @pl.when(s == 0)
    def _():
        acc_ref[...] = jnp.zeros_like(acc_ref)

    t = t_ref[0].astype(jnp.int32)                     # (sb, 128)

    # ---- log-softmax over the class axis, unrolled over the leading C dim ----
    # Every operand here is a fully packed (sb, 128) tile: VPU max/add/select,
    # EUP exp, no cross-sublane XLU reductions.
    m = x_ref[0, 0].astype(jnp.float32)
    for c in range(1, C):
        m = jnp.maximum(m, x_ref[0, c].astype(jnp.float32))

    sumexp = jnp.zeros_like(m)
    z_sel = jnp.zeros_like(m)                          # (x - m) at the target class
    at = jnp.zeros_like(m) if alpha_vals is not None else None
    for c in range(C):
        zc = x_ref[0, c].astype(jnp.float32) - m
        sumexp = sumexp + jnp.exp(zc)
        hit = t == c
        z_sel = jnp.where(hit, zc, z_sel)
        if alpha_vals is not None:
            # alpha is a compile-time Python float -> pure VPU select chain,
            # no captured array constant, no extra DMA.
            at = jnp.where(hit, float(alpha_vals[c]), at)

    logpt = z_sel - jnp.log(sumexp)                    # (sb, 128)
    pt = jnp.exp(logpt)
    if alpha_vals is not None:
        logpt = logpt * at

    # focal modulation (1 - pt) ** gamma; integer gamma -> plain VPU multiplies
    g = float(gamma)
    if g.is_integer() and 0.0 <= g <= 8.0:
        focal = jnp.ones_like(pt)
        omp = 1.0 - pt
        for _ in range(int(g)):
            focal = focal * omp
    else:
        focal = jnp.power(1.0 - pt, g)

    loss = -1.0 * focal * logpt                        # (sb, 128)

    # ---- accumulate; mask only on tiles that actually reach past S ----
    if has_pad:
        tile = p * n_s + s
        start = tile * (sb * lanes)
        fits = (start + sb * lanes) <= spatial_size

        @pl.when(fits)
        def _():
            acc_ref[...] += loss

        @pl.when(jnp.logical_not(fits))
        def _():
            row = jax.lax.broadcasted_iota(jnp.int32, (sb, lanes), 0)
            lane = jax.lax.broadcasted_iota(jnp.int32, (sb, lanes), 1)
            flat = start + row * lanes + lane
            # Mask the LOSS (not the inputs) before accumulating so padded
            # positions can never contribute NaN/Inf to the sum.
            acc_ref[...] += jnp.where(flat < spatial_size, loss, 0.0)
    else:
        acc_ref[...] += loss

    @pl.when(s == n_s - 1)
    def _():
        # Single cross-sublane reduce per (batch, core); output stays lane-dense.
        out_ref[...] = jnp.sum(acc_ref[...], axis=0,
                               keepdims=True).reshape(1, 1, 1, lanes)


def _round_up(v, m):
    return (v + m - 1) // m * m


def focal_loss_3d_pallas(x, target, gamma=1.0, alpha=None, size_average=True,
                         block_bytes=2 * 1024 * 1024, nsplit=2):
    """Forward pass of focal_loss_3d.  x: (N, C, *spatial) float, target: (N, *spatial) int."""
    N, C = x.shape[0], x.shape[1]

    x3 = x.reshape(N, C, -1)                     # (N, C, S) -- free reshape
    S = x3.shape[2]

    # Narrow target stream when it fits (cuts ~3/4 of target HBM bytes).
    tgt_dtype = jnp.int8 if C <= 127 else jnp.int32
    t2 = target.reshape(N, -1).astype(tgt_dtype)  # (N, S)

    # alpha setup (mirrors __init__): float -> [a, 1-a]; list -> tensor; None -> no-op
    if alpha is None:
        alpha_vals = None
    else:
        if isinstance(alpha, (float, int)):
            a_list = [float(alpha), 1.0 - float(alpha)]
        else:
            a_list = [float(v) for v in alpha]
        if len(a_list) < C:
            # TODO(synk): PyTorch's alpha.gather raises for targets >= len(alpha);
            # we pad with a neutral 1.0 weight instead of faking an error.
            a_list = a_list + [1.0] * (C - len(a_list))
        alpha_vals = tuple(a_list[:C])

    # Spatial layout: S -> (rows, 128) so the class axis becomes a leading dim
    # and every per-class tile is a fully packed (sb, 128) slab.
    LANES = 128
    SB = pl.cdiv(S, LANES)                        # rows of 128 positions
    # sb rows per tile: multiple of 32 (safe for int8 target tiling too),
    # ~block_bytes of f32 logits per block.
    sb_cap = (block_bytes // (C * LANES * 4)) // 32 * 32
    sb_cap = max(32, min(sb_cap, 2048))
    sb = min(sb_cap, _round_up(pl.cdiv(SB, nsplit), 32))
    grid_s = pl.cdiv(SB, nsplit * sb)
    rows_pad = nsplit * grid_s * sb
    S_pad = rows_pad * LANES
    has_pad = S_pad != S
    if has_pad:
        # TODO(synk): padding costs one HBM copy when S is not a multiple of the
        # tile footprint; the padded tail is masked out inside the kernel.
        x3 = jnp.pad(x3, ((0, 0), (0, 0), (0, S_pad - S)))
        t2 = jnp.pad(t2, ((0, 0), (0, S_pad - S)))
    x4 = x3.reshape(N, C, rows_pad, LANES)        # (N, C, rows, 128)
    t3 = t2.reshape(N, rows_pad, LANES)           # (N, rows, 128)

    kernel = functools.partial(
        _focal_loss_kernel,
        gamma=float(gamma),
        alpha_vals=alpha_vals,
        spatial_size=S,
        has_pad=has_pad,
    )

    partial_sums = pl.pallas_call(
        kernel,
        out_shape=jax.ShapeDtypeStruct((N, nsplit, 1, LANES), jnp.float32),
        grid_spec=pltpu.PrefetchScalarGridSpec(
            num_scalar_prefetch=0,
            grid=(N, nsplit, grid_s),
            in_specs=[
                pl.BlockSpec((1, C, sb, LANES),
                             lambda n, p, s: (n, 0, p * grid_s + s, 0)),
                pl.BlockSpec((1, sb, LANES),
                             lambda n, p, s: (n, p * grid_s + s, 0)),
            ],
            out_specs=pl.BlockSpec((1, 1, 1, LANES),
                                   lambda n, p, s: (n, p, 0, 0)),
            scratch_shapes=[pltpu.VMEM((sb, LANES), jnp.float32)],
        ),
        compiler_params=pltpu.CompilerParams(
            dimension_semantics=("parallel", "parallel", "arbitrary"),
            vmem_limit_bytes=32 * 1024 * 1024,
        ),
    )(x4, t3)

    total = jnp.sum(partial_sums)
    M = N * S
    if size_average:
        return total / jnp.float32(M)
    return total


if __name__ == "__main__":
    key = jax.random.PRNGKey(0)
    kx, kt = jax.random.split(key)

    # Small 3D shapes: (N, C, D, H, W) logits, (N, D, H, W) integer targets.
    N, C, D, H, W = 2, 4, 4, 8, 8
    x = jax.random.normal(kx, (N, C, D, H, W), dtype=jnp.float32)
    target = jax.random.randint(kt, (N, D, H, W), 0, C, dtype=jnp.int32)

    gamma = 2.0
    alpha = [0.1, 0.2, 0.3, 0.4]  # deterministic per-class weights (len == C)

    loss = focal_loss_3d_pallas(x, target, gamma=gamma, alpha=alpha, size_average=True)
    loss = jax.block_until_ready(loss)

    # Pure-JAX reference (mirrors the torch view/transpose/view exactly).
    x2 = x.reshape(N, C, -1).transpose(0, 2, 1).reshape(-1, C)
    t2 = target.reshape(-1)
    logp = jax.nn.log_softmax(x2, axis=1)
    logpt = jnp.take_along_axis(logp, t2[:, None], axis=1)[:, 0]
    pt = jnp.exp(logpt)
    at = jnp.asarray(alpha, jnp.float32)[t2]
    ref = jnp.mean(-1.0 * (1.0 - pt) ** gamma * (logpt * at))

    assert jnp.allclose(loss, ref, rtol=1e-5, atol=1e-6), (float(loss), float(ref))
    print("KERNEL_OK")
</pallas_src>

<mosaic_0001>
module attributes {stable_mosaic.version = 11 : i64} {
  func.func @_focal_loss_kernel(%arg0: i32, %arg1: i32, %arg2: i32, %arg3: memref<1x4x32x128xf32, #tpu.memory_space<vmem>>, %arg4: memref<1x32x128xi8, #tpu.memory_space<vmem>>, %arg5: memref<1x1x1x128xf32, #tpu.memory_space<vmem>>, %arg6: memref<32x128xf32, #tpu.memory_space<vmem>>) attributes {dimension_semantics = [#tpu.dimension_semantics<parallel>, #tpu.dimension_semantics<parallel>, #tpu.dimension_semantics<arbitrary>], iteration_bounds = array<i64: 2, 2, 1>, scalar_prefetch = 0 : i64, scratch_operands = 1 : i64, tpu.core_type = #tpu.core_type<tc>, window_params = [{transform_indices = @transform_0, window_bounds = array<i64: 1, 4, 32, 128>}, {transform_indices = @transform_1, window_bounds = array<i64: 1, 32, 128>}, {transform_indices = @transform_2, window_bounds = array<i64: 1, 1, 1, 128>}]} {
    %c0_i32 = arith.constant 0 : i32
    %0 = arith.cmpi eq, %arg2, %c0_i32 : i32
    %1 = arith.extui %0 : i1 to i32
    %c0_i32_0 = arith.constant 0 : i32
    %2 = arith.cmpi ne, %1, %c0_i32_0 : i32
    scf.if %2 {
      %cst_48 = arith.constant 0.000000e+00 : f32
      %85 = vector.broadcast %cst_48 : f32 to vector<32x128xf32>
      %c0_49 = arith.constant 0 : index
      %c0_50 = arith.constant 0 : index
      %86 = vector.load %arg6[%c0_49, %c0_50] : memref<32x128xf32, #tpu.memory_space<vmem>>, vector<32x128xf32>
      tpu.vector_store %arg6[%c0_49, %c0_50], %85 {strides = array<i32>} : memref<32x128xf32, #tpu.memory_space<vmem>>, vector<32x128xf32>,
    } else {
    }
    %c0 = arith.constant 0 : index
    %c0_1 = arith.constant 0 : index
    %c0_2 = arith.constant 0 : index
    %3 = vector.load %arg4[%c0, %c0_1, %c0_2] : memref<1x32x128xi8, #tpu.memory_space<vmem>>, vector<1x32x128xi8>
    %4 = vector.shape_cast %3 : vector<1x32x128xi8> to vector<32x128xi8>
    %5 = arith.extsi %4 : vector<32x128xi8> to vector<32x128xi32>
    %c0_3 = arith.constant 0 : index
    %c0_4 = arith.constant 0 : index
    %c0_5 = arith.constant 0 : index
    %c0_6 = arith.constant 0 : index
    %6 = vector.load %arg3[%c0_3, %c0_4, %c0_5, %c0_6] : memref<1x4x32x128xf32, #tpu.memory_space<vmem>>, vector<1x1x32x128xf32>
    %7 = vector.shape_cast %6 : vector<1x1x32x128xf32> to vector<32x128xf32>
    %c0_7 = arith.constant 0 : index
    %c1 = arith.constant 1 : index
    %c0_8 = arith.constant 0 : index
    %c0_9 = arith.constant 0 : index
    %8 = vector.load %arg3[%c0_7, %c1, %c0_8, %c0_9] : memref<1x4x32x128xf32, #tpu.memory_space<vmem>>, vector<1x1x32x128xf32>
    %9 = vector.shape_cast %8 : vector<1x1x32x128xf32> to vector<32x128xf32>
    %10 = arith.maximumf %7, %9 : vector<32x128xf32>
    %c0_10 = arith.constant 0 : index
    %c2 = arith.constant 2 : index
    %c0_11 = arith.constant 0 : index
    %c0_12 = arith.constant 0 : index
    %11 = vector.load %arg3[%c0_10, %c2, %c0_11, %c0_12] : memref<1x4x32x128xf32, #tpu.memory_space<vmem>>, vector<1x1x32x128xf32>
    %12 = vector.shape_cast %11 : vector<1x1x32x128xf32> to vector<32x128xf32>
    %13 = arith.maximumf %10, %12 : vector<32x128xf32>
    %c0_13 = arith.constant 0 : index
    %c3 = arith.constant 3 : index
    %c0_14 = arith.constant 0 : index
    %c0_15 = arith.constant 0 : index
    %14 = vector.load %arg3[%c0_13, %c3, %c0_14, %c0_15] : memref<1x4x32x128xf32, #tpu.memory_space<vmem>>, vector<1x1x32x128xf32>
    %15 = vector.shape_cast %14 : vector<1x1x32x128xf32> to vector<32x128xf32>
    %16 = arith.maximumf %13, %15 : vector<32x128xf32>
    %cst = arith.constant 0.000000e+00 : f32
    %17 = vector.broadcast %cst : f32 to vector<32x128xf32>
    %cst_16 = arith.constant 0.000000e+00 : f32
    %18 = vector.broadcast %cst_16 : f32 to vector<32x128xf32>
    %cst_17 = arith.constant 0.000000e+00 : f32
    %19 = vector.broadcast %cst_17 : f32 to vector<32x128xf32>
    %c0_18 = arith.constant 0 : index
    %c0_19 = arith.constant 0 : index
    %c0_20 = arith.constant 0 : index
    %c0_21 = arith.constant 0 : index
    %20 = vector.load %arg3[%c0_18, %c0_19, %c0_20, %c0_21] : memref<1x4x32x128xf32, #tpu.memory_space<vmem>>, vector<1x1x32x128xf32>
    %21 = vector.shape_cast %20 : vector<1x1x32x128xf32> to vector<32x128xf32>
    %22 = arith.subf %21, %16 : vector<32x128xf32>
    %23 = math.exp %22 : vector<32x128xf32>
    %24 = arith.addf %17, %23 : vector<32x128xf32>
    %c0_i32_22 = arith.constant 0 : i32
    %25 = vector.broadcast %c0_i32_22 : i32 to vector<32x128xi32>
    %26 = arith.cmpi eq, %5, %25 : vector<32x128xi32>
    %27 = arith.select %26, %22, %18 : vector<32x128xi1>, vector<32x128xf32>
    %cst_23 = arith.constant 1.000000e-01 : f32
    %28 = vector.broadcast %cst_23 : f32 to vector<32x128xf32>
    %29 = arith.select %26, %28, %19 : vector<32x128xi1>, vector<32x128xf32>
    %c0_24 = arith.constant 0 : index
    %c1_25 = arith.constant 1 : index
    %c0_26 = arith.constant 0 : index
    %c0_27 = arith.constant 0 : index
    %30 = vector.load %arg3[%c0_24, %c1_25, %c0_26, %c0_27] : memref<1x4x32x128xf32, #tpu.memory_space<vmem>>, vector<1x1x32x128xf32>
    %31 = vector.shape_cast %30 : vector<1x1x32x128xf32> to vector<32x128xf32>
    %32 = arith.subf %31, %16 : vector<32x128xf32>
    %33 = math.exp %32 : vector<32x128xf32>
    %34 = arith.addf %24, %33 : vector<32x128xf32>
    %c1_i32 = arith.constant 1 : i32
    %35 = vector.broadcast %c1_i32 : i32 to vector<32x128xi32>
    %36 = arith.cmpi eq, %5, %35 : vector<32x128xi32>
    %37 = arith.select %36, %32, %27 : vector<32x128xi1>, vector<32x128xf32>
    %cst_28 = arith.constant 2.000000e-01 : f32
    %38 = vector.broadcast %cst_28 : f32 to vector<32x128xf32>
    %39 = arith.select %36, %38, %29 : vector<32x128xi1>, vector<32x128xf32>
    %c0_29 = arith.constant 0 : index
    %c2_30 = arith.constant 2 : index
    %c0_31 = arith.constant 0 : index
    %c0_32 = arith.constant 0 : index
    %40 = vector.load %arg3[%c0_29, %c2_30, %c0_31, %c0_32] : memref<1x4x32x128xf32, #tpu.memory_space<vmem>>, vector<1x1x32x128xf32>
    %41 = vector.shape_cast %40 : vector<1x1x32x128xf32> to vector<32x128xf32>
    %42 = arith.subf %41, %16 : vector<32x128xf32>
    %43 = math.exp %42 : vector<32x128xf32>
    %44 = arith.addf %34, %43 : vector<32x128xf32>
    %c2_i32 = arith.constant 2 : i32
    %45 = vector.broadcast %c2_i32 : i32 to vector<32x128xi32>
    %46 = arith.cmpi eq, %5, %45 : vector<32x128xi32>
    %47 = arith.select %46, %42, %37 : vector<32x128xi1>, vector<32x128xf32>
    %cst_33 = arith.constant 3.000000e-01 : f32
    %48 = vector.broadcast %cst_33 : f32 to vector<32x128xf32>
    %49 = arith.select %46, %48, %39 : vector<32x128xi1>, vector<32x128xf32>
    %c0_34 = arith.constant 0 : index
    %c3_35 = arith.constant 3 : index
    %c0_36 = arith.constant 0 : index
    %c0_37 = arith.constant 0 : index
    %50 = vector.load %arg3[%c0_34, %c3_35, %c0_36, %c0_37] : memref<1x4x32x128xf32, #tpu.memory_space<vmem>>, vector<1x1x32x128xf32>
    %51 = vector.shape_cast %50 : vector<1x1x32x128xf32> to vector<32x128xf32>
    %52 = arith.subf %51, %16 : vector<32x128xf32>
    %53 = math.exp %52 : vector<32x128xf32>
    %54 = arith.addf %44, %53 : vector<32x128xf32>
    %c3_i32 = arith.constant 3 : i32
    %55 = vector.broadcast %c3_i32 : i32 to vector<32x128xi32>
    %56 = arith.cmpi eq, %5, %55 : vector<32x128xi32>
    %57 = arith.select %56, %52, %47 : vector<32x128xi1>, vector<32x128xf32>
    %cst_38 = arith.constant 4.000000e-01 : f32
    %58 = vector.broadcast %cst_38 : f32 to vector<32x128xf32>
    %59 = arith.select %56, %58, %49 : vector<32x128xi1>, vector<32x128xf32>
    %60 = math.log %54 : vector<32x128xf32>
    %61 = arith.subf %57, %60 : vector<32x128xf32>
    %62 = math.exp %61 : vector<32x128xf32>
    %63 = arith.mulf %61, %59 : vector<32x128xf32>
    %cst_39 = arith.constant 1.000000e+00 : f32
    %64 = vector.broadcast %cst_39 : f32 to vector<32x128xf32>
    %cst_40 = arith.constant 1.000000e+00 : f32
    %65 = vector.broadcast %cst_40 : f32 to vector<32x128xf32>
    %66 = arith.subf %65, %62 : vector<32x128xf32>
    %67 = arith.mulf %64, %66 : vector<32x128xf32>
    %68 = arith.mulf %67, %66 : vector<32x128xf32>
    %cst_41 = arith.constant -1.000000e+00 : f32
    %69 = vector.broadcast %cst_41 : f32 to vector<32x128xf32>
    %70 = arith.mulf %69, %68 : vector<32x128xf32>
    %71 = arith.mulf %70, %63 : vector<32x128xf32>
    %c1_i32_42 = arith.constant 1 : i32
    %72 = arith.muli %arg1, %c1_i32_42 : i32
    %73 = arith.addi %72, %arg2 : i32
    %c4096_i32 = arith.constant 4096 : i32
    %74 = arith.muli %73, %c4096_i32 : i32
    %c4096_i32_43 = arith.constant 4096 : i32
    %75 = arith.addi %74, %c4096_i32_43 : i32
    %c256_i32 = arith.constant 256 : i32
    %76 = arith.cmpi sle, %75, %c256_i32 : i32
    %77 = arith.extui %76 : i1 to i32
    %c0_i32_44 = arith.constant 0 : i32
    %78 = arith.cmpi ne, %77, %c0_i32_44 : i32
    scf.if %78 {
      %c0_48 = arith.constant 0 : index
      %c0_49 = arith.constant 0 : index
      %85 = vector.load %arg6[%c0_48, %c0_49] : memref<32x128xf32, #tpu.memory_space<vmem>>, vector<32x128xf32>
      %86 = arith.addf %85, %71 : vector<32x128xf32>
      %c0_50 = arith.constant 0 : index
      %c0_51 = arith.constant 0 : index
      %87 = vector.load %arg6[%c0_50, %c0_51] : memref<32x128xf32, #tpu.memory_space<vmem>>, vector<32x128xf32>
      tpu.vector_store %arg6[%c0_50, %c0_51], %86 {strides = array<i32>} : memref<32x128xf32, #tpu.memory_space<vmem>>, vector<32x128xf32>,
    } else {
    }
    %true = arith.constant true
    %79 = arith.xori %76, %true : i1
    %80 = arith.extui %79 : i1 to i32
    %c0_i32_45 = arith.constant 0 : i32
    %81 = arith.cmpi ne, %80, %c0_i32_45 : i32
    scf.if %81 {
      %85 = tpu.iota {dimensions = array<i32: 0>} : vector<32x128xi32>
      %86 = tpu.iota {dimensions = array<i32: 1>} : vector<32x128xi32>
      %c128_i32 = arith.constant 128 : i32
      %87 = vector.broadcast %c128_i32 : i32 to vector<32x128xi32>
      %88 = arith.muli %85, %87 : vector<32x128xi32>
      %89 = vector.broadcast %74 : i32 to vector<32x128xi32>
      %90 = arith.addi %89, %88 : vector<32x128xi32>
      %91 = arith.addi %90, %86 : vector<32x128xi32>
      %c0_48 = arith.constant 0 : index
      %c0_49 = arith.constant 0 : index
      %92 = vector.load %arg6[%c0_48, %c0_49] : memref<32x128xf32, #tpu.memory_space<vmem>>, vector<32x128xf32>
      %c256_i32_50 = arith.constant 256 : i32
      %93 = vector.broadcast %c256_i32_50 : i32 to vector<32x128xi32>
      %94 = arith.cmpi slt, %91, %93 : vector<32x128xi32>
      %cst_51 = arith.constant 0.000000e+00 : f32
      %95 = vector.broadcast %cst_51 : f32 to vector<32x128xf32>
      %96 = arith.select %94, %71, %95 : vector<32x128xi1>, vector<32x128xf32>
      %97 = arith.addf %92, %96 : vector<32x128xf32>
      %c0_52 = arith.constant 0 : index
      %c0_53 = arith.constant 0 : index
      %98 = vector.load %arg6[%c0_52, %c0_53] : memref<32x128xf32, #tpu.memory_space<vmem>>, vector<32x128xf32>
      tpu.vector_store %arg6[%c0_52, %c0_53], %97 {strides = array<i32>} : memref<32x128xf32, #tpu.memory_space<vmem>>, vector<32x128xf32>,
    } else {
    }
    %c0_i32_46 = arith.constant 0 : i32
    %82 = arith.cmpi eq, %arg2, %c0_i32_46 : i32
    %83 = arith.extui %82 : i1 to i32
    %c0_i32_47 = arith.constant 0 : i32
    %84 = arith.cmpi ne, %83, %c0_i32_47 : i32
    scf.if %84 {
      %c0_48 = arith.constant 0 : index
      %c0_49 = arith.constant 0 : index
      %85 = vector.load %arg6[%c0_48, %c0_49] : memref<32x128xf32, #tpu.memory_space<vmem>>, vector<32x128xf32>
      %cst_50 = arith.constant dense<0.000000e+00> : vector<128xf32>
      %86 = vector.multi_reduction <add>, %85, %cst_50 [0] : vector<32x128xf32> to vector<128xf32>
      %87 = vector.shape_cast %86 : vector<128xf32> to vector<1x128xf32>
      %88 = vector.shape_cast %87 : vector<1x128xf32> to vector<1x1x1x128xf32>
      %c0_51 = arith.constant 0 : index
      %c0_52 = arith.constant 0 : index
      %c0_53 = arith.constant 0 : index
      %c0_54 = arith.constant 0 : index
      %89 = vector.load %arg5[%c0_51, %c0_52, %c0_53, %c0_54] : memref<1x1x1x128xf32, #tpu.memory_space<vmem>>, vector<1x1x1x128xf32>
      tpu.vector_store %arg5[%c0_51, %c0_52, %c0_53, %c0_54], %88 {strides = array<i32>} : memref<1x1x1x128xf32, #tpu.memory_space<vmem>>, vector<1x1x1x128xf32>,
    } else {
    }
    return
  }
  func.func @transform_0(%arg0: i32, %arg1: i32, %arg2: i32) -> (i32, i32, i32, i32) {
    %c1_i32 = arith.constant 1 : i32
    %0 = arith.muli %arg1, %c1_i32 : i32
    %1 = arith.addi %0, %arg2 : i32
    %c0_i32 = arith.constant 0 : i32
    %c0_i32_0 = arith.constant 0 : i32
    %c0_i32_1 = arith.constant 0 : i32
    return %arg0, %c0_i32, %1, %c0_i32_0 : i32, i32, i32, i32
  }
  func.func @transform_1(%arg0: i32, %arg1: i32, %arg2: i32) -> (i32, i32, i32) {
    %c1_i32 = arith.constant 1 : i32
    %0 = arith.muli %arg1, %c1_i32 : i32
    %1 = arith.addi %0, %arg2 : i32
    %c0_i32 = arith.constant 0 : i32
    %c0_i32_0 = arith.constant 0 : i32
    return %arg0, %1, %c0_i32 : i32, i32, i32
  }
  func.func @transform_2(%arg0: i32, %arg1: i32, %arg2: i32) -> (i32, i32, i32, i32) {
    %c0_i32 = arith.constant 0 : i32
    %c0_i32_0 = arith.constant 0 : i32
    %c0_i32_1 = arith.constant 0 : i32
    return %arg0, %arg1, %c0_i32, %c0_i32_0 : i32, i32, i32, i32
  }
}

</mosaic_0001>

<llo_original>
// kernel: tpu_custom_call.1
$region0: #{tpu_custom_call.1}
  #allocation0 [shape = 'u32[]', space=smem, size = 0x4, offset = 0x4, fixed_abs, tag = 'smem constant byte address 0x4 - core index']
  #allocation1 [shape = 'u32[144,128]{1,0:T(1,128)}', space=vmem, size = 0x12000, scoped, tag = 'internal scratch']
  #allocation2 [shape = 'f32[32,128]{1,0:T(8,128)}', space=vmem, size = 0x4000, scoped, tag = 'scratch operand']
  #allocation9 [shape = 's32[]', space=sflag, size = 0x4, offset = 0, fixed_abs, tag = 'sflag constant byte address 0x0 - dummy sync flag']
  %s0 = inlined_call_operand.hbm [shape: f32[2,4,64,128], index: 0, kind: input, shape index: {}]
  %s1 = inlined_call_operand.hbm [shape: s8[2,64,128], index: 1, kind: input, shape index: {}]
  %s2 = inlined_call_operand.hbm [shape: f32[2,2,1,128], index: 2, kind: output, shape index: {}]
  %s3 = sld [smem:[#allocation0]]
  $region65: #{tpu_custom_call.1} parent=0
    _
  %s5 = ssub.s32 1, %s3
  %s6 = scalar_select 0, %s5, %s3
  $region1: #{tpu_custom_call.1} parent=0
    #allocation3 [shape = 'u8[131072]{0}', space=vmem, size = 0x20000, scoped, tag = 'input window, operand 0']
    #allocation4 [shape = 's32[2]{0}', space=sflag, size = 0x8, scoped, tag = 'scoped memory for tpu_custom_call.1']
    #allocation5 [shape = 's32[2]{0}', space=sflag, size = 0x8, scoped, tag = 'scoped memory for tpu_custom_call.1']
    #allocation6 [shape = 'u8[8192]{0}', space=vmem, size = 0x2000, scoped, tag = 'input window, operand 1']
    #allocation7 [shape = 's32[2]{0}', space=sflag, size = 0x8, scoped, tag = 'scoped memory for tpu_custom_call.1']
    #allocation8 [shape = 'u8[1024]{0}', space=vmem, size = 0x400, scoped, tag = 'output window, operand 0']
    %7 = vsyncpa [#allocation4], 0
    %s8 = scalar_lea.sflag [#allocation4], 1
    %9 = vsyncpa %s8, 0
    %10 = vsyncpa [#allocation7], 0
    %s11 = scalar_lea.sflag [#allocation7], 1
    %12 = vsyncpa %s11, 0
    %13 = vsyncpa [#allocation5], 0
    %s14 = scalar_lea.sflag [#allocation5], 1
    %15 = vsyncpa %s14, 0
    loop: start=0, step=1, limit=6
    $region2: #{tpu_custom_call.1} parent=1 // loop_pre_header
      _
    $region3: #{tpu_custom_call.1} parent=1 // loop_header
      %s17 = sphi 0, %s21
      %p18 = scmp.ge.s32.totalorder %s17, 6
      %s24 = sphi 0, %s43
      %s25 = sphi 0, %s39
      %s26 = sphi 0, %s35
      %s27 = sphi 0, %s24
      %s28 = sphi 0, %s25
      %s29 = sphi 0, %s26
      %s30 = sphi 0, %s27
      %s31 = sphi 0, %s28
      %s32 = sphi 0, %s29
      %s50 = sphi 0, %s52
      %s53 = sphi 0, %s50
      %s54 = sphi 0, %s53
      %s70 = sphi 0, %s54
      %s80 = sphi 0, %s82
      %s83 = sphi 0, %s80
      %s84 = sphi 0, %s83
      %s100 = sphi 0, %s84
      %s108 = sphi 0, %s110
      %s111 = sphi 0, %s108
      %s112 = sphi 0, %s111
      %s128 = sphi 0, %s112
    $region4: #{tpu_custom_call.1} parent=1 // loop_header_branch
      %20 = sbr.rel (%p18) target = $region8
    $region5: #{tpu_custom_call.1} parent=1 // loop_body
      %s22 = ssub.s32 %s17, 1
      %s23 = ssub.s32 %s17, 2
      %s33 = sadd.s32 1, %s26
      %p34 = scmp.ge.s32.totalorder %s33, 1
      %s35 = scalar_select %p34, 0, %s33
      %s36 = sadd.s32 1, %s25
      %s37 = scalar_select %p34, %s36, %s25
      %p38 = scmp.ge.s32.totalorder %s37, 2
      %s39 = scalar_select %p38, 0, %s37
      %s40 = sadd.s32 1, %s24
      %s41 = scalar_select %p38, %s40, %s24
      %p42 = scmp.ge.s32.totalorder %s41, 2
      %s43 = scalar_select %p42, 0, %s41
      %s44 = sadd.s32 %s25, %s26
      %s45 = sadd.s32 %s39, %s35
      %s46 = ssub.s32 %s24, %s43
      %s47 = ssub.s32 %s44, %s45
      %s48 = sor.u32 %s46, %s47
      %p49 = scmp.eq.s32.totalorder %s48, 0
      %s51 = sadd.s32 %s50, 1
      %s52 = scalar_select %p49, %s50, %s51
      %p55 = pneg %p49
      %p56 = scmp.eq.s32.totalorder %s17, 3
      %p57 = por %p55, %p56
      %p58 = scmp.ne.s32.totalorder %s50, %s53
      %p59 = scmp.eq.s32.totalorder %s17, 0
      %p60 = por %p58, %p59
      %p61 = scmp.ne.s32.totalorder %s50, %s53
      %p62 = scmp.eq.s32.totalorder %s22, 3
      %p63 = por %p61, %p62
      %p64 = scmp.ne.s32.totalorder %s53, %s54
      %p65 = scmp.eq.s32.totalorder %s22, 0
      %p66 = por %p64, %p65
      %p67 = scmp.ne.s32.totalorder %s53, %s54
      %p68 = scmp.eq.s32.totalorder %s23, 3
      %p69 = por %p67, %p68
      %p71 = scmp.ne.s32.totalorder %s54, %s70
      %p72 = scmp.eq.s32.totalorder %s23, 0
      %p73 = por %p71, %p72
      %s74 = sadd.s32 %s25, %s26
      %s75 = sadd.s32 %s39, %s35
      %s76 = ssub.s32 %s24, %s43
      %s77 = ssub.s32 %s74, %s75
      %s78 = sor.u32 %s76, %s77
      %p79 = scmp.eq.s32.totalorder %s78, 0
      %s81 = sadd.s32 %s80, 1
      %s82 = scalar_select %p79, %s80, %s81
      %p85 = pneg %p79
      %p86 = scmp.eq.s32.totalorder %s17, 3
      %p87 = por %p85, %p86
      %p88 = scmp.ne.s32.totalorder %s80, %s83
      %p89 = scmp.eq.s32.totalorder %s17, 0
      %p90 = por %p88, %p89
      %p91 = scmp.ne.s32.totalorder %s80, %s83
      %p92 = scmp.eq.s32.totalorder %s22, 3
      %p93 = por %p91, %p92
      %p94 = scmp.ne.s32.totalorder %s83, %s84
      %p95 = scmp.eq.s32.totalorder %s22, 0
      %p96 = por %p94, %p95
      %p97 = scmp.ne.s32.totalorder %s83, %s84
      %p98 = scmp.eq.s32.totalorder %s23, 3
      %p99 = por %p97, %p98
      %p101 = scmp.ne.s32.totalorder %s84, %s100
      %p102 = scmp.eq.s32.totalorder %s23, 0
      %p103 = por %p101, %p102
      %s104 = ssub.s32 %s24, %s43
      %s105 = ssub.s32 %s25, %s39
      %s106 = sor.u32 %s104, %s105
      %p107 = scmp.eq.s32.totalorder %s106, 0
      %s109 = sadd.s32 %s108, 1
      %s110 = scalar_select %p107, %s108, %s109
      %p113 = pneg %p107
      %p114 = scmp.eq.s32.totalorder %s17, 3
      %p115 = por %p113, %p114
      %p116 = scmp.ne.s32.totalorder %s108, %s111
      %p117 = scmp.eq.s32.totalorder %s17, 0
      %p118 = por %p116, %p117
      %p119 = scmp.ne.s32.totalorder %s108, %s111
      %p120 = scmp.eq.s32.totalorder %s22, 3
      %p121 = por %p119, %p120
      %p122 = scmp.ne.s32.totalorder %s111, %s112
      %p123 = scmp.eq.s32.totalorder %s22, 0
      %p124 = por %p122, %p123
      %p125 = scmp.ne.s32.totalorder %s111, %s112
      %p126 = scmp.eq.s32.totalorder %s23, 3
      %p127 = por %p125, %p126
      %p129 = scmp.ne.s32.totalorder %s112, %s128
      %p130 = scmp.eq.s32.totalorder %s23, 0
      %p131 = por %p129, %p130
      %p132 = scmp.le.s32.totalorder 1, %s17
      %p133 = scmp.lt.s32.totalorder %s17, 5
      %p134 = pnand %p132, %p133
      %p135 = pneg %p134
      // Predicated region
      $region9: #{tpu_custom_call.1} parent=5 // pred_check
        _
      $region10: #{tpu_custom_call.1} parent=5 // pred_check_branch
        %137 = sbr.rel (%p134) target = $region12
      $region11: #{tpu_custom_call.1} parent=5 // pred_region
        %s138 = ssub.s32 %s17, 1
      $region12: #{tpu_custom_call.1} parent=5 // pred_fallthru
        _
      %p139 = scmp.lt.s32.totalorder %s17, 4
      // Predicated region
      $region13: #{tpu_custom_call.1} parent=5 // pred_check
        %p140 = pneg %p139
      $region14: #{tpu_custom_call.1} parent=5 // pred_check_branch
        %142 = sbr.rel (%p140) target = $region16
      $region15: #{tpu_custom_call.1} parent=5 // pred_region
        // Predicated region
        $region17: #{tpu_custom_call.1} parent=15 // pred_check
          %p143 = pneg %p60
        $region18: #{tpu_custom_call.1} parent=15 // pred_check_branch
          %145 = sbr.rel (%p143) target = $region20
        $region19: #{tpu_custom_call.1} parent=15 // pred_region
          #allocation10 [shape = 'u32[6]{0}', space=smem, size = 0x18, scoped, tag = 'DMA stride descriptor']
          %s146 = sand.u32 %s50, 1
          %s147 = scalar_lea.sflag [#allocation4], %s146
          %s148 = sand.u32 %s50, 1
          %s149 = smul.addr %s148, 128
          %s150 = scalar_lea.vmem [#allocation3], %s149
          %s151 = sadd.s32 %s25, %s26
          %s152 = smul.u32 4, %s151
          %s154 = ssub.s32 2048, 2048
          %155 = vsyncadd %s147, %s154
          %s156 = smul.addr %s24, 32
          %s157 = sadd.s32 %s152, %s156
          %s158 = smul.addr %s157, 128
          %s159 = scalar_lea.hbm %s0, %s158
          %s161 = sshll.u32 1, 14
          %s162 = sxor.u32 4294967295, %s161
          %s164 = sld [smem:[#allocation0]]
          %s165 = sadd.s32 2, %s164
          %s167 = sshll.u32 7, 26
          %s168 = sxor.u32 4294967295, %s167
          %s169 = sand.u32 0, %s168
          %s170 = sshll.u32 %s165, 26
          %s171 = sor.u32 %s169, %s170
          %s172 = sshll.u32 %s150, 4
          %s173 = int_to_ptr.vmem [resolvable:$true] %s172
          %179 = sst [smem:[#allocation10]] 1024
          %s180 = scalar_lea.smem [#allocation10], 1
          %181 = sst [smem:[%s180]] 512
          %s182 = scalar_lea.smem [#allocation10], 2
          %183 = sst [smem:[%s182]] 4
          %s184 = scalar_lea.smem [#allocation10], 3
          %185 = sst [smem:[%s184]] 128
          %s186 = scalar_lea.smem [#allocation10], 4
          %187 = sst [smem:[%s186]] 128
          %s188 = scalar_lea.smem [#allocation10], 5
          %189 = sst [smem:[%s188]] 8
          %191 = dma.general %s159, 2048, %s173, %s147, [#allocation9], [#allocation10], %s171, 0
        $region20: #{tpu_custom_call.1} parent=15 // pred_fallthru
          _
        // Predicated region
        $region21: #{tpu_custom_call.1} parent=15 // pred_check
          %p192 = pneg %p90
        $region22: #{tpu_custom_call.1} parent=15 // pred_check_branch
          %194 = sbr.rel (%p192) target = $region24
        $region23: #{tpu_custom_call.1} parent=15 // pred_region
          %s195 = sand.u32 %s80, 1
          %s196 = scalar_lea.sflag [#allocation7], %s195
          %s197 = sand.u32 %s80, 1
          %s198 = smul.addr %s197, 8
          %s199 = scalar_lea.vmem [#allocation6], %s198
          %s200 = sadd.s32 %s25, %s26
          %s202 = ssub.s32 128, 128
          %203 = vsyncadd %s196, %s202
          %s204 = smul.addr %s24, 2
          %s205 = sadd.s32 %s200, %s204
          %s206 = smul.addr %s205, 128
          %s207 = scalar_lea.hbm %s1, %s206
          %s209 = sshll.u32 %s199, 4
          %s210 = int_to_ptr.vmem [resolvable:$true] %s209
          %212 = dma.hbm_to_vmem [thread:$0]  %s207, 128, %s210, %s196
        $region24: #{tpu_custom_call.1} parent=15 // pred_fallthru
          _
      $region16: #{tpu_custom_call.1} parent=5 // pred_fallthru
        _
      %p213 = scmp.le.s32.totalorder 1, %s17
      %p214 = scmp.lt.s32.totalorder %s17, 5
      %p215 = pnand %p213, %p214
      %p216 = pneg %p215
      // Predicated region
      $region25: #{tpu_custom_call.1} parent=5 // pred_check
        _
      $region26: #{tpu_custom_call.1} parent=5 // pred_check_branch
        %218 = sbr.rel (%p215) target = $region28
      $region27: #{tpu_custom_call.1} parent=5 // pred_region
        %s219 = ssub.s32 %s17, 1
        %s220 = sand.u32 %s53, 1
        %s221 = scalar_lea.sflag [#allocation4], %s220
        %s222 = sand.u32 %s53, 1
        %s223 = smul.addr %s222, 128
        %s224 = scalar_lea.vmem [#allocation3], %s223
        // Predicated region
        $region29: #{tpu_custom_call.1} parent=27 // pred_check
          %p225 = pneg %p66
        $region30: #{tpu_custom_call.1} parent=27 // pred_check_branch
          %227 = sbr.rel (%p225) target = $region32
        $region31: #{tpu_custom_call.1} parent=27 // pred_region
          %228 = dma.done %s221, 2048
        $region32: #{tpu_custom_call.1} parent=27 // pred_fallthru
          _
        %s229 = sand.u32 %s83, 1
        %s230 = scalar_lea.sflag [#allocation7], %s229
        %s231 = sand.u32 %s83, 1
        %s232 = smul.addr %s231, 8
        %s233 = scalar_lea.vmem [#allocation6], %s232
        // Predicated region
        $region33: #{tpu_custom_call.1} parent=27 // pred_check
          %p234 = pneg %p96
        $region34: #{tpu_custom_call.1} parent=27 // pred_check_branch
          %236 = sbr.rel (%p234) target = $region36
        $region35: #{tpu_custom_call.1} parent=27 // pred_region
          %237 = dma.done %s230, 128
        $region36: #{tpu_custom_call.1} parent=27 // pred_fallthru
          _
        %s238 = sand.u32 %s53, 1
        %s239 = scalar_lea.sflag [#allocation4], %s238
        %s240 = sand.u32 %s53, 1
        %s241 = smul.addr %s240, 128
        %s242 = scalar_lea.vmem [#allocation3], %s241
        %p243 = pneg %p66
        %p244 = pneg %p63
        %s245 = sand.u32 %s83, 1
        %s246 = scalar_lea.sflag [#allocation7], %s245
        %s247 = sand.u32 %s83, 1
        %s248 = smul.addr %s247, 8
        %s249 = scalar_lea.vmem [#allocation6], %s248
        %p250 = pneg %p96
        %p251 = pneg %p93
        %p252 = pneg %p124
        %p253 = pneg %p121
        %s254 = sand.u32 %s111, 1
        %s255 = scalar_lea.sflag [#allocation5], %s254
        %s256 = sand.u32 %s111, 1
        %s257 = scalar_lea.vmem [#allocation8], %s256
        %s258 = sadd.s32 %s28, %s29
        %s259 = smul.u32 4, %s258
        %s260 = sadd.s32 %s28, %s29
        %p261 = scmp.eq.s32.totalorder %s29, 0
        // Predicated region
        $region37: #{tpu_custom_call.1} parent=27 // pred_check
          %p262 = pneg %p261
        $region38: #{tpu_custom_call.1} parent=27 // pred_check_branch
          %264 = sbr.rel (%p262) target = $region40
        $region39: #{tpu_custom_call.1} parent=27 // pred_region
          %265 = vst [vmem:[#allocation2] sm:$0xff] 0.0
          %266 = vst [vmem:[#allocation2 + $0x8] sm:$0xff] 0.0
          %267 = vst [vmem:[#allocation2 + $0x10] sm:$0xff] 0.0
          %268 = vst [vmem:[#allocation2 + $0x18] sm:$0xff] 0.0
        $region40: #{tpu_custom_call.1} parent=27 // pred_fallthru
          _
        %v269 = vld [vmem:[%s233] sm:$0xff]
        %v270 = vunpack.c.0.s8 %v269
        %v271 = vunpack.c.1.s8 %v269
        %v272 = vunpack.c.2.s8 %v269
        %v273 = vunpack.c.3.s8 %v269
        %v274 = vld [vmem:[%s224] sm:$0xff]
        %v275 = vld [vmem:[%s224 + $0x8] sm:$0xff]
        %v276 = vld [vmem:[%s224 + $0x10] sm:$0xff]
        %v277 = vld [vmem:[%s224 + $0x18] sm:$0xff]
        %s278 = scalar_lea.vmem %s224, 32 [#allocation3]
        %v279 = vld [vmem:[%s278] sm:$0xff]
        %v280 = vld [vmem:[%s278 + $0x8] sm:$0xff]
        %v281 = vld [vmem:[%s278 + $0x10] sm:$0xff]
        %v282 = vld [vmem:[%s278 + $0x18] sm:$0xff]
        %v283 = vmax.f32 %v274, %v279
        %v284 = vmax.f32 %v275, %v280
        %v285 = vmax.f32 %v276, %v281
        %v286 = vmax.f32 %v277, %v282
        %s287 = scalar_lea.vmem %s224, 64 [#allocation3]
        %v288 = vld [vmem:[%s287] sm:$0xff]
        %v289 = vld [vmem:[%s287 + $0x8] sm:$0xff]
        %v290 = vld [vmem:[%s287 + $0x10] sm:$0xff]
        %v291 = vld [vmem:[%s287 + $0x18] sm:$0xff]
        %v292 = vmax.f32 %v283, %v288
        %v293 = vmax.f32 %v284, %v289
        %v294 = vmax.f32 %v285, %v290
        %v295 = vmax.f32 %v286, %v291
        %s296 = scalar_lea.vmem %s224, 96 [#allocation3]
        %v297 = vld [vmem:[%s296] sm:$0xff]
        %v298 = vld [vmem:[%s296 + $0x8] sm:$0xff]
        %v299 = vld [vmem:[%s296 + $0x10] sm:$0xff]
        %v300 = vld [vmem:[%s296 + $0x18] sm:$0xff]
        %v301 = vmax.f32 %v292, %v297
        %v302 = vmax.f32 %v293, %v298
        %v303 = vmax.f32 %v294, %v299
        %v304 = vmax.f32 %v295, %v300
        %v305 = vsub.f32 %v274, %v301
        %v306 = vsub.f32 %v275, %v302
        %v307 = vsub.f32 %v276, %v303
        %v308 = vsub.f32 %v277, %v304
        %v309 = vmul.f32 %v305, 1.442695
        %v310 = vpow.pop %v309
        %v311 = vmul.f32 %v306, 1.442695
        %v312 = vpow.pop %v311
        %v313 = vmul.f32 %v307, 1.442695
        %v314 = vpow.pop %v313
        %v315 = vmul.f32 %v308, 1.442695
        %v316 = vpow.pop %v315
        %v317 = vadd.f32 %v310, 0.0
        %v318 = vadd.f32 %v312, 0.0
        %v319 = vadd.f32 %v314, 0.0
        %v320 = vadd.f32 %v316, 0.0
        %vm321 = vcmp.eq.s32.totalorder %v270, 0
        %vm322 = vcmp.eq.s32.totalorder %v271, 0
        %vm323 = vcmp.eq.s32.totalorder %v272, 0
        %vm324 = vcmp.eq.s32.totalorder %v273, 0
        %v325 = vsel %vm321, %v305, 0.0
        %v326 = vsel %vm322, %v306, 0.0
        %v327 = vsel %vm323, %v307, 0.0
        %v328 = vsel %vm324, %v308, 0.0
        %v329 = vsel %vm321, 0.1, 0.0
        %v330 = vsel %vm322, 0.1, 0.0
        %v331 = vsel %vm323, 0.1, 0.0
        %v332 = vsel %vm324, 0.1, 0.0
        %v333 = vsub.f32 %v279, %v301
        %v334 = vsub.f32 %v280, %v302
        %v335 = vsub.f32 %v281, %v303
        %v336 = vsub.f32 %v282, %v304
        %v337 = vmul.f32 %v333, 1.442695
        %v338 = vpow.pop %v337
        %v339 = vmul.f32 %v334, 1.442695
        %v340 = vpow.pop %v339
        %v341 = vmul.f32 %v335, 1.442695
        %v342 = vpow.pop %v341
        %v343 = vmul.f32 %v336, 1.442695
        %v344 = vpow.pop %v343
        %v345 = vadd.f32 %v317, %v338
        %v346 = vadd.f32 %v318, %v340
        %v347 = vadd.f32 %v319, %v342
        %v348 = vadd.f32 %v320, %v344
        %vm349 = vcmp.eq.s32.totalorder %v270, 1
        %vm350 = vcmp.eq.s32.totalorder %v271, 1
        %vm351 = vcmp.eq.s32.totalorder %v272, 1
        %vm352 = vcmp.eq.s32.totalorder %v273, 1
        %v353 = vsel %vm349, %v333, %v325
        %v354 = vsel %vm350, %v334, %v326
        %v355 = vsel %vm351, %v335, %v327
        %v356 = vsel %vm352, %v336, %v328
        %v357 = vsel %vm349, 0.2, %v329
        %v358 = vsel %vm350, 0.2, %v330
        %v359 = vsel %vm351, 0.2, %v331
        %v360 = vsel %vm352, 0.2, %v332
        %v361 = vsub.f32 %v288, %v301
        %v362 = vsub.f32 %v289, %v302
        %v363 = vsub.f32 %v290, %v303
        %v364 = vsub.f32 %v291, %v304
        %v365 = vmul.f32 %v361, 1.442695
        %v366 = vpow.pop %v365
        %v367 = vmul.f32 %v362, 1.442695
        %v368 = vpow.pop %v367
        %v369 = vmul.f32 %v363, 1.442695
        %v370 = vpow.pop %v369
        %v371 = vmul.f32 %v364, 1.442695
        %v372 = vpow.pop %v371
        %v373 = vadd.f32 %v345, %v366
        %v374 = vadd.f32 %v346, %v368
        %v375 = vadd.f32 %v347, %v370
        %v376 = vadd.f32 %v348, %v372
        %vm377 = vcmp.eq.s32.totalorder %v270, 2
        %vm378 = vcmp.eq.s32.totalorder %v271, 2
        %vm379 = vcmp.eq.s32.totalorder %v272, 2
        %vm380 = vcmp.eq.s32.totalorder %v273, 2
        %v381 = vsel %vm377, %v361, %v353
        %v382 = vsel %vm378, %v362, %v354
        %v383 = vsel %vm379, %v363, %v355
        %v384 = vsel %vm380, %v364, %v356
        %v385 = vsel %vm377, 0.3, %v357
        %v386 = vsel %vm378, 0.3, %v358
        %v387 = vsel %vm379, 0.3, %v359
        %v388 = vsel %vm380, 0.3, %v360
        %v389 = vsub.f32 %v297, %v301
        %v390 = vsub.f32 %v298, %v302
        %v391 = vsub.f32 %v299, %v303
        %v392 = vsub.f32 %v300, %v304
        %v393 = vmul.f32 %v389, 1.442695
        %v394 = vpow.pop %v393
        %v395 = vmul.f32 %v390, 1.442695
        %v396 = vpow.pop %v395
        %v397 = vmul.f32 %v391, 1.442695
        %v398 = vpow.pop %v397
        %v399 = vmul.f32 %v392, 1.442695
        %v400 = vpow.pop %v399
        %v401 = vadd.f32 %v373, %v394
        %v402 = vadd.f32 %v374, %v396
        %v403 = vadd.f32 %v375, %v398
        %v404 = vadd.f32 %v376, %v400
        %vm405 = vcmp.eq.s32.totalorder %v270, 3
        %vm406 = vcmp.eq.s32.totalorder %v271, 3
        %vm407 = vcmp.eq.s32.totalorder %v272, 3
        %vm408 = vcmp.eq.s32.totalorder %v273, 3
        %v409 = vsel %vm405, %v389, %v381
        %v410 = vsel %vm406, %v390, %v382
        %v411 = vsel %vm407, %v391, %v383
        %v412 = vsel %vm408, %v392, %v384
        %v413 = vsel %vm405, 0.4, %v385
        %v414 = vsel %vm406, 0.4, %v386
        %v415 = vsel %vm407, 0.4, %v387
        %v416 = vsel %vm408, 0.4, %v388
        %v417 = vlog2.pop %v401
        %v418 = vmul.f32 %v417, 0.6931472
        %v419 = vlog2.pop %v402
        %v420 = vmul.f32 %v419, 0.6931472
        %v421 = vlog2.pop %v403
        %v422 = vmul.f32 %v421, 0.6931472
        %v423 = vlog2.pop %v404
        %v424 = vmul.f32 %v423, 0.6931472
        %v425 = vsub.f32 %v409, %v418
        %v426 = vsub.f32 %v410, %v420
        %v427 = vsub.f32 %v411, %v422
        %v428 = vsub.f32 %v412, %v424
        %v429 = vmul.f32 %v425, 1.442695
        %v430 = vpow.pop %v429
        %v431 = vmul.f32 %v426, 1.442695
        %v432 = vpow.pop %v431
        %v433 = vmul.f32 %v427, 1.442695
        %v434 = vpow.pop %v433
        %v435 = vmul.f32 %v428, 1.442695
        %v436 = vpow.pop %v435
        %v437 = vmul.f32 %v425, %v413
        %v438 = vmul.f32 %v426, %v414
        %v439 = vmul.f32 %v427, %v415
        %v440 = vmul.f32 %v428, %v416
        %v441 = vsub.f32 1.0, %v430
        %v442 = vsub.f32 1.0, %v432
        %v443 = vsub.f32 1.0, %v434
        %v444 = vsub.f32 1.0, %v436
        %v445 = vmul.f32 %v441, %v441
        %v446 = vmul.f32 %v442, %v442
        %v447 = vmul.f32 %v443, %v443
        %v448 = vmul.f32 %v444, %v444
        %v449 = vmul.f32 %v445, -1.0
        %v450 = vmul.f32 %v446, -1.0
        %v451 = vmul.f32 %v447, -1.0
        %v452 = vmul.f32 %v448, -1.0
        %v453 = vmul.f32 %v449, %v437
        %v454 = vmul.f32 %v450, %v438
        %v455 = vmul.f32 %v451, %v439
        %v456 = vmul.f32 %v452, %v440
        %s457 = sadd.s32 %s28, %s29
        %s458 = smul.u32 %s457, 4096
        %s459 = sadd.s32 %s458, 4096
        %p460 = scmp.le.s32.totalorder %s459, 256
        // Predicated region
        $region41: #{tpu_custom_call.1} parent=27 // pred_check
          %p461 = pneg %p460
        $region42: #{tpu_custom_call.1} parent=27 // pred_check_branch
          %463 = sbr.rel (%p461) target = $region44
        $region43: #{tpu_custom_call.1} parent=27 // pred_region
          %v464 = vld [vmem:[#allocation2] sm:$0xff]
          %v465 = vld [vmem:[#allocation2 + $0x8] sm:$0xff]
          %v466 = vld [vmem:[#allocation2 + $0x10] sm:$0xff]
          %v467 = vld [vmem:[#allocation2 + $0x18] sm:$0xff]
          %v468 = vadd.f32 %v464, %v453
          %v469 = vadd.f32 %v465, %v454
          %v470 = vadd.f32 %v466, %v455
          %v471 = vadd.f32 %v467, %v456
          %472 = vst [vmem:[#allocation2] sm:$0xff] %v468
          %473 = vst [vmem:[#allocation2 + $0x8] sm:$0xff] %v469
          %474 = vst [vmem:[#allocation2 + $0x10] sm:$0xff] %v470
          %475 = vst [vmem:[#allocation2 + $0x18] sm:$0xff] %v471
        $region44: #{tpu_custom_call.1} parent=27 // pred_fallthru
          _
        %p476 = scmp.gt.s32.totalorder %s459, 256
        // Predicated region
        $region45: #{tpu_custom_call.1} parent=27 // pred_check
          %p477 = pneg %p476
        $region46: #{tpu_custom_call.1} parent=27 // pred_check_branch
          %479 = sbr.rel (%p477) target = $region48
        $region47: #{tpu_custom_call.1} parent=27 // pred_region
          %v480 = vlaneseq
          %v481 = vshrl.u32 %v480, 7
          %v482 = vadd.s32 %v481, 8
          %v483 = vadd.s32 %v481, 16
          %v484 = vadd.s32 %v481, 24
          %v485 = vlaneseq
          %v486 = vand.u32 %v485, 127
          %v487 = vmul.u32 %v481, 128
          %v488 = vmul.u32 %v482, 128
          %v489 = vmul.u32 %v483, 128
          %v490 = vmul.u32 %v484, 128
          %v491 = vstv %s458
          %v492 = vadd.s32 %v491, %v487
          %v493 = vadd.s32 %v491, %v488
          %v494 = vadd.s32 %v491, %v489
          %v495 = vadd.s32 %v491, %v490
          %v496 = vadd.s32 %v492, %v486
          %v497 = vadd.s32 %v493, %v486
          %v498 = vadd.s32 %v494, %v486
          %v499 = vadd.s32 %v495, %v486
          %v500 = vld [vmem:[#allocation2] sm:$0xff]
          %v501 = vld [vmem:[#allocation2 + $0x8] sm:$0xff]
          %v502 = vld [vmem:[#allocation2 + $0x10] sm:$0xff]
          %v503 = vld [vmem:[#allocation2 + $0x18] sm:$0xff]
          %vm504 = vcmp.lt.s32.totalorder %v496, 256
          %vm505 = vcmp.lt.s32.totalorder %v497, 256
          %vm506 = vcmp.lt.s32.totalorder %v498, 256
          %vm507 = vcmp.lt.s32.totalorder %v499, 256
          %v508 = vsel %vm504, %v453, 0.0
          %v509 = vsel %vm505, %v454, 0.0
          %v510 = vsel %vm506, %v455, 0.0
          %v511 = vsel %vm507, %v456, 0.0
          %v512 = vadd.f32 %v500, %v508
          %v513 = vadd.f32 %v501, %v509
          %v514 = vadd.f32 %v502, %v510
          %v515 = vadd.f32 %v503, %v511
          %516 = vst [vmem:[#allocation2] sm:$0xff] %v512
          %517 = vst [vmem:[#allocation2 + $0x8] sm:$0xff] %v513
          %518 = vst [vmem:[#allocation2 + $0x10] sm:$0xff] %v514
          %519 = vst [vmem:[#allocation2 + $0x18] sm:$0xff] %v515
        $region48: #{tpu_custom_call.1} parent=27 // pred_fallthru
          _
        // Predicated region
        $region49: #{tpu_custom_call.1} parent=27 // pred_check
          %p520 = pneg %p261
        $region50: #{tpu_custom_call.1} parent=27 // pred_check_branch
          %522 = sbr.rel (%p520) target = $region52
        $region51: #{tpu_custom_call.1} parent=27 // pred_region
          %v523 = vld [vmem:[#allocation2] sm:$0xff]
          %v524 = vld [vmem:[#allocation2 + $0x8] sm:$0xff]
          %v525 = vld [vmem:[#allocation2 + $0x10] sm:$0xff]
          %v526 = vld [vmem:[#allocation2 + $0x18] sm:$0xff]
          %v527 = vadd.f32 %v523, %v524
          %v528 = vadd.f32 %v527, %v525
          %v529 = vadd.f32 %v528, %v526
          %v530 = vrot.slane %v529, 4
          %v531 = vadd.f32 %v529, %v530
          %v532 = vrot.slane %v531, 2
          %v533 = vadd.f32 %v531, %v532
          %v534 = vrot.slane %v533, 1
          %v535 = vadd.f32 %v533, %v534
          %536 = vst [vmem:[%s257] sm:$0x1] %v535
        $region52: #{tpu_custom_call.1} parent=27 // pred_fallthru
          _
        %s537 = sand.u32 %s111, 1
        %s538 = scalar_lea.sflag [#allocation5], %s537
        %s539 = sand.u32 %s111, 1
        %s540 = scalar_lea.vmem [#allocation8], %s539
        // Predicated region
        $region53: #{tpu_custom_call.1} parent=27 // pred_check
          %p541 = pneg %p121
        $region54: #{tpu_custom_call.1} parent=27 // pred_check_branch
          %543 = sbr.rel (%p541) target = $region56
        $region55: #{tpu_custom_call.1} parent=27 // pred_region
          %s545 = ssub.s32 16, 16
          %546 = vsyncadd %s538, %s545
          %s547 = smul.addr %s27, 2
          %s548 = sadd.s32 %s28, %s547
          %s549 = smul.addr %s548, 16
          %s550 = scalar_lea.hbm %s2, %s549
          %s552 = sshll.u32 %s540, 4
          %s553 = int_to_ptr.vmem [resolvable:$true] %s552
          %555 = dma.vmem_to_hbm [thread:$0]  %s553, 16, %s550, %s538
        $region56: #{tpu_custom_call.1} parent=27 // pred_fallthru
          _
      $region28: #{tpu_custom_call.1} parent=5 // pred_fallthru
        _
      %p556 = scmp.le.s32.totalorder 2, %s17
      // Predicated region
      $region57: #{tpu_custom_call.1} parent=5 // pred_check
        %p557 = pneg %p556
      $region58: #{tpu_custom_call.1} parent=5 // pred_check_branch
        %559 = sbr.rel (%p557) target = $region60
      $region59: #{tpu_custom_call.1} parent=5 // pred_region
        %s560 = ssub.s32 %s17, 2
        // Predicated region
        $region61: #{tpu_custom_call.1} parent=59 // pred_check
          %p561 = pneg %p127
        $region62: #{tpu_custom_call.1} parent=59 // pred_check_branch
          %563 = sbr.rel (%p561) target = $region64
        $region63: #{tpu_custom_call.1} parent=59 // pred_region
          %s564 = sand.u32 %s112, 1
          %s565 = scalar_lea.sflag [#allocation5], %s564
          %s566 = sand.u32 %s112, 1
          %s567 = scalar_lea.vmem [#allocation8], %s566
          %568 = dma.done %s565, 16
        $region64: #{tpu_custom_call.1} parent=59 // pred_fallthru
          _
      $region60: #{tpu_custom_call.1} parent=5 // pred_fallthru
        _
    $region6: #{tpu_custom_call.1} parent=1 // loop_footer
      %s21 = sadd.s32 1, %s17
    $region7: #{tpu_custom_call.1} parent=1 // loop_footer_branch
      %16 = sbr.rel target = $region3
    $region8: #{tpu_custom_call.1} parent=1 // loop_exit
      _
    %569 = vsyncpa [#allocation4], 1
    %s570 = scalar_lea.sflag [#allocation4], 1
    %571 = vsyncpa %s570, 1
    %572 = vsyncpa [#allocation7], 1
    %s573 = scalar_lea.sflag [#allocation7], 1
    %574 = vsyncpa %s573, 1
    %575 = vsyncpa [#allocation5], 1
    %s576 = scalar_lea.sflag [#allocation5], 1
    %577 = vsyncpa %s576, 1

</llo_original>
